<compile_context>
chip_gen: v7x
topology: tpu7x:2x2x1
jax: 0.10.0
libtpu: 0.0.40
codegen_flags: <defaults>
</compile_context>

<pallas_src>
import jax
import jax.numpy as jnp
from jax import lax
from jax.experimental import pallas as pl
from jax.experimental.pallas import tpu as pltpu


# --------------------------------------------------------------------------- #
# Path 1: tables resident in VMEM, one-hot MXU gather (small vocabularies).
# --------------------------------------------------------------------------- #
def mf_resident_kernel(uid_ref, iid_ref,      # VMEM blocks: (TB, 1) int32 ids
                       bias_ref,              # VMEM block:  (TB, 1) f32 fused bias
                       w_ref, u_ref,          # VMEM resident: (n_users,K)/(n_items,K)
                       out_ref):              # VMEM block:  (TB, 1) f32
    tb = out_ref.shape[0]
    n_users = w_ref.shape[0]
    n_items = u_ref.shape[0]

    uid = uid_ref[...]                                            # (TB, 1) i32
    iid = iid_ref[...]

    # Row gather as a one-hot matmul on the MXU (exact for f32 tables).
    oh_u = (lax.broadcasted_iota(jnp.int32, (tb, n_users), 1) == uid)
    oh_i = (lax.broadcasted_iota(jnp.int32, (tb, n_items), 1) == iid)
    w_rows = jnp.dot(oh_u.astype(jnp.float32), w_ref[...],
                     preferred_element_type=jnp.float32)          # (TB, K)
    u_rows = jnp.dot(oh_i.astype(jnp.float32), u_ref[...],
                     preferred_element_type=jnp.float32)          # (TB, K)

    wu = jnp.sum(w_rows * u_rows, axis=-1, keepdims=True)         # (TB, 1)
    out_ref[...] = bias_ref[...] + wu


# --------------------------------------------------------------------------- #
# Path 2: fused HBM row-gather, double-buffered sub-tiles, aggregate waits.
# --------------------------------------------------------------------------- #
def mf_hbm_kernel(uid_ref, iid_ref,           # SMEM scalar-prefetch: (B_pad,) i32
                  bias_ref,                   # VMEM block: (TB, 1) f32 fused bias
                  w_hbm, u_hbm,               # HBM refs (pl.ANY): (n_*, K) f32
                  out_ref,                    # VMEM block: (TB, 1) f32
                  w_buf, u_buf,               # VMEM scratch: (2, SUB, K) f32
                  sem):                       # DMA sems: (2, 2) -> [operand, slot]
    sub_rows = w_buf.shape[1]                 # rows per DMA sub-tile
    n_sub = out_ref.shape[0] // sub_rows      # sub-tiles per grid step (static)
    step_base = pl.program_id(0) * out_ref.shape[0]

    def issue(sub, slot):
        base = step_base + sub * sub_rows

        def body8(r8, carry):                 # 8-way manual unroll: lets the LLO
            r0 = pl.multiple_of(r8 * 8, 8)    # scheduler co-issue id loads,
            for j in range(8):                # address math and descriptor pushes
                r = r0 + j
                uid = uid_ref[base + r]
                iid = iid_ref[base + r]
                pltpu.make_async_copy(w_hbm.at[pl.ds(uid, 1), :],
                                      w_buf.at[slot, pl.ds(r, 1), :],
                                      sem.at[0, slot]).start()
                pltpu.make_async_copy(u_hbm.at[pl.ds(iid, 1), :],
                                      u_buf.at[slot, pl.ds(r, 1), :],
                                      sem.at[1, slot]).start()
            return carry

        lax.fori_loop(0, sub_rows // 8, body8, 0)

    def wait(slot):
        # ONE aggregate wait per operand: the (SUB, K) descriptor's byte count
        # equals the sum of the SUB per-row signals (both tables are f32[K];
        # this scheme breaks if W/U ever get different dtypes / row widths).
        pltpu.make_async_copy(w_buf.at[slot], w_buf.at[slot], sem.at[0, slot]).wait()
        pltpu.make_async_copy(u_buf.at[slot], u_buf.at[slot], sem.at[1, slot]).wait()

    issue(0, 0)                               # prime slot 0

    @pl.loop(0, n_sub)
    def _(s):
        slot = s % 2

        @pl.when(s + 1 < n_sub)
        def _():                              # overlap next sub-tile's HBM gather
            issue(s + 1, 1 - slot)            # with this sub-tile's drain/compute

        wait(slot)

        wu = jnp.sum(w_buf[slot] * u_buf[slot], axis=-1, keepdims=True)
        o0 = pl.multiple_of(s * sub_rows, sub_rows)
        out_ref[pl.ds(o0, sub_rows), :] = bias_ref[pl.ds(o0, sub_rows), :] + wu


# --------------------------------------------------------------------------- #
# Wrapper
# --------------------------------------------------------------------------- #
def _round_up(x, m):
    return ((x + m - 1) // m) * m


def _pick_tiles(batch, tb, sub):
    """Rows per grid step (multiple of `sub`); keep >= 2 grid steps when possible
    so v7x's two TensorCores both get work under dimension_semantics=parallel."""
    sub = max(8, (sub // 8) * 8)
    tb = max(sub, (tb // sub) * sub)
    b_min = _round_up(batch, sub)
    tb = min(tb, b_min)
    if b_min >= 2 * sub and tb > b_min // 2:
        tb = max(sub, ((b_min // 2) // sub) * sub)
    b_pad = _round_up(batch, tb)
    return tb, b_pad, sub


def mf_forward(W, U, bias_user, bias_item, global_mean, user_ids, item_ids,
               *, tb=512, tb_sub=64, path="auto"):
    """Pallas-backed forward pass. Returns f32 array of shape (B,)."""
    W = jnp.asarray(W, jnp.float32)
    U = jnp.asarray(U, jnp.float32)
    bias_user = jnp.asarray(bias_user, jnp.float32)
    bias_item = jnp.asarray(bias_item, jnp.float32)

    B = int(user_ids.shape[0])
    n_users, K = int(W.shape[0]), int(W.shape[1])
    n_items = int(U.shape[0])

    if path == "auto":
        table_bytes = (n_users + n_items) * K * 4
        resident_ok = (n_users <= 2048 and n_items <= 2048
                       and table_bytes <= 8 * 1024 * 1024)   # safe on v7x 32 MiB scoped
        path = "resident" if resident_ok else "hbm"

    if path == "resident":
        tb, b_pad, _ = _pick_tiles(B, min(tb, 256), 8)
    else:
        tb, b_pad, tb_sub = _pick_tiles(B, tb, tb_sub)

    uid = jnp.asarray(user_ids, jnp.int32)
    iid = jnp.asarray(item_ids, jnp.int32)
    if b_pad != B:
        pad = b_pad - B
        uid = jnp.concatenate([uid, jnp.zeros((pad,), jnp.int32)])
        iid = jnp.concatenate([iid, jnp.zeros((pad,), jnp.int32)])

    # Fold the tiny per-row bias gathers + the global mean into ONE operand.
    bias = (bias_user[uid] + bias_item[iid]
            + jnp.asarray(global_mean, jnp.float32))[:, None]    # (B_pad, 1)

    num_tiles = b_pad // tb

    if path == "resident":
        grid_spec = pltpu.PrefetchScalarGridSpec(
            num_scalar_prefetch=0,
            grid=(num_tiles,),
            in_specs=[
                pl.BlockSpec((tb, 1), lambda i: (i, 0)),          # user ids
                pl.BlockSpec((tb, 1), lambda i: (i, 0)),          # item ids
                pl.BlockSpec((tb, 1), lambda i: (i, 0)),          # fused bias
                pl.BlockSpec((n_users, K), lambda i: (0, 0)),     # W resident in VMEM
                pl.BlockSpec((n_items, K), lambda i: (0, 0)),     # U resident in VMEM
            ],
            out_specs=pl.BlockSpec((tb, 1), lambda i: (i, 0)),
        )
        cost = pl.CostEstimate(
            flops=2 * b_pad * K * (1 + n_users + n_items),
            transcendentals=0,
            bytes_accessed=(n_users + n_items) * K * 4 + 4 * b_pad * 4)
        out = pl.pallas_call(
            mf_resident_kernel,
            out_shape=jax.ShapeDtypeStruct((b_pad, 1), jnp.float32),
            grid_spec=grid_spec,
            compiler_params=pltpu.CompilerParams(
                dimension_semantics=("parallel",)),
            cost_estimate=cost,
        )(uid[:, None], iid[:, None], bias, W, U)
    else:
        grid_spec = pltpu.PrefetchScalarGridSpec(
            num_scalar_prefetch=2,                 # uid, iid -> SMEM
            grid=(num_tiles,),
            in_specs=[
                pl.BlockSpec((tb, 1), lambda i, *_: (i, 0)),      # fused bias
                pl.BlockSpec(memory_space=pl.ANY),                # W stays in HBM
                pl.BlockSpec(memory_space=pl.ANY),                # U stays in HBM
            ],
            out_specs=pl.BlockSpec((tb, 1), lambda i, *_: (i, 0)),
            scratch_shapes=[
                pltpu.VMEM((2, tb_sub, K), jnp.float32),          # W double buffer
                pltpu.VMEM((2, tb_sub, K), jnp.float32),          # U double buffer
                pltpu.SemaphoreType.DMA((2, 2)),                  # [operand, slot]
            ],
        )
        cost = pl.CostEstimate(
            flops=2 * b_pad * K,
            transcendentals=0,
            bytes_accessed=2 * b_pad * K * 4 + 3 * b_pad * 4)
        out = pl.pallas_call(
            mf_hbm_kernel,
            out_shape=jax.ShapeDtypeStruct((b_pad, 1), jnp.float32),
            grid_spec=grid_spec,
            compiler_params=pltpu.CompilerParams(
                dimension_semantics=("parallel",)),
            cost_estimate=cost,
        )(uid, iid, bias, W, U)

    return out[:B, 0]


if __name__ == "__main__":
    # Small, module-consistent shapes (non-multiple-of-tile batch exercises padding).
    n_users, n_items, K, B = 64, 80, 32, 200
    global_mean_val = 3.5

    key = jax.random.PRNGKey(0)
    k_w, k_u, k_bu, k_bi, k_uid, k_iid = jax.random.split(key, 6)

    W = jax.random.normal(k_w, (n_users, K), dtype=jnp.float32)
    U = jax.random.normal(k_u, (n_items, K), dtype=jnp.float32)
    # Module initializes biases to zero; use small random values so the bias
    # path of the forward is actually exercised by the check.
    bias_user = 0.1 * jax.random.normal(k_bu, (n_users,), dtype=jnp.float32)
    bias_item = 0.1 * jax.random.normal(k_bi, (n_items,), dtype=jnp.float32)
    global_mean = jnp.float32(global_mean_val)

    user_ids = jax.random.randint(k_uid, (B,), 0, n_users, dtype=jnp.int32)
    item_ids = jax.random.randint(k_iid, (B,), 0, n_items, dtype=jnp.int32)

    # Pure-JAX reference (same semantics as the PyTorch forward).
    ref = (bias_user[user_ids] + bias_item[item_ids] + global_mean
           + jnp.einsum('ij,ij->i', W[user_ids], U[item_ids]))

    # Exercise both paths: resident-VMEM one-hot gather and fused HBM row-gather.
    out_res = jax.block_until_ready(
        mf_forward(W, U, bias_user, bias_item, global_mean,
                   user_ids, item_ids, path="resident"))
    out_hbm = jax.block_until_ready(
        mf_forward(W, U, bias_user, bias_item, global_mean,
                   user_ids, item_ids, path="hbm"))

    assert out_res.shape == (B,) and out_hbm.shape == (B,)
    assert jnp.allclose(out_res, ref, rtol=1e-5, atol=1e-4), \
        float(jnp.max(jnp.abs(out_res - ref)))
    assert jnp.allclose(out_hbm, ref, rtol=1e-5, atol=1e-4), \
        float(jnp.max(jnp.abs(out_hbm - ref)))

    print("KERNEL_OK")
</pallas_src>

<mosaic_0001>
module attributes {stable_mosaic.version = 11 : i64} {
  func.func @mf_resident_kernel(%arg0: i32, %arg1: memref<96x1xi32, #tpu.memory_space<vmem>>, %arg2: memref<96x1xi32, #tpu.memory_space<vmem>>, %arg3: memref<96x1xf32, #tpu.memory_space<vmem>>, %arg4: memref<64x32xf32, #tpu.memory_space<vmem>>, %arg5: memref<80x32xf32, #tpu.memory_space<vmem>>, %arg6: memref<96x1xf32, #tpu.memory_space<vmem>>) attributes {dimension_semantics = [#tpu.dimension_semantics<parallel>], iteration_bounds = array<i64: 3>, scalar_prefetch = 0 : i64, scratch_operands = 0 : i64, tpu.core_type = #tpu.core_type<tc>, window_params = [{transform_indices = @transform_0, window_bounds = array<i64: 96, 1>}, {transform_indices = @transform_1, window_bounds = array<i64: 96, 1>}, {transform_indices = @transform_2, window_bounds = array<i64: 96, 1>}, {pipeline_mode = #tpu.pipeline_mode<synchronous>, transform_indices = @transform_3, window_bounds = array<i64: 64, 32>}, {pipeline_mode = #tpu.pipeline_mode<synchronous>, transform_indices = @transform_4, window_bounds = array<i64: 80, 32>}, {transform_indices = @transform_5, window_bounds = array<i64: 96, 1>}]} {
    %c0 = arith.constant 0 : index
    %c0_0 = arith.constant 0 : index
    %0 = vector.load %arg1[%c0, %c0_0] : memref<96x1xi32, #tpu.memory_space<vmem>>, vector<96x1xi32>
    %c0_1 = arith.constant 0 : index
    %c0_2 = arith.constant 0 : index
    %1 = vector.load %arg2[%c0_1, %c0_2] : memref<96x1xi32, #tpu.memory_space<vmem>>, vector<96x1xi32>
    %2 = tpu.iota {dimensions = array<i32: 1>} : vector<96x64xi32>
    %3 = vector.broadcast %0 : vector<96x1xi32> to vector<96x64xi32>
    %4 = arith.cmpi eq, %2, %3 : vector<96x64xi32>
    %5 = tpu.iota {dimensions = array<i32: 1>} : vector<96x80xi32>
    %6 = vector.broadcast %1 : vector<96x1xi32> to vector<96x80xi32>
    %7 = arith.cmpi eq, %5, %6 : vector<96x80xi32>
    %8 = arith.extui %4 : vector<96x64xi1> to vector<96x64xi32>
    %9 = arith.sitofp %8 : vector<96x64xi32> to vector<96x64xf32>
    %c0_3 = arith.constant 0 : index
    %c0_4 = arith.constant 0 : index
    %10 = vector.load %arg4[%c0_3, %c0_4] : memref<64x32xf32, #tpu.memory_space<vmem>>, vector<64x32xf32>
    %cst = arith.constant dense<0.000000e+00> : vector<96x32xf32>
    %11 = tpu.matmul %9, %10, %cst {dimension_numbers = #tpu.dot_dimension_numbers<[1], [0], [0], [1], [0, 0, 1, 1], [], []>} : vector<96x64xf32>, vector<64x32xf32>, vector<96x32xf32> -> vector<96x32xf32>
    %12 = arith.extui %7 : vector<96x80xi1> to vector<96x80xi32>
    %13 = arith.sitofp %12 : vector<96x80xi32> to vector<96x80xf32>
    %c0_5 = arith.constant 0 : index
    %c0_6 = arith.constant 0 : index
    %14 = vector.load %arg5[%c0_5, %c0_6] : memref<80x32xf32, #tpu.memory_space<vmem>>, vector<80x32xf32>
    %cst_7 = arith.constant dense<0.000000e+00> : vector<96x32xf32>
    %15 = tpu.matmul %13, %14, %cst_7 {dimension_numbers = #tpu.dot_dimension_numbers<[1], [0], [0], [1], [0, 0, 1, 1], [], []>} : vector<96x80xf32>, vector<80x32xf32>, vector<96x32xf32> -> vector<96x32xf32>
    %16 = arith.mulf %11, %15 : vector<96x32xf32>
    %cst_8 = arith.constant dense<0.000000e+00> : vector<96xf32>
    %17 = vector.multi_reduction <add>, %16, %cst_8 [1] : vector<96x32xf32> to vector<96xf32>
    %18 = vector.shape_cast %17 : vector<96xf32> to vector<96x1xf32>
    %c0_9 = arith.constant 0 : index
    %c0_10 = arith.constant 0 : index
    %19 = vector.load %arg3[%c0_9, %c0_10] : memref<96x1xf32, #tpu.memory_space<vmem>>, vector<96x1xf32>
    %20 = arith.addf %19, %18 : vector<96x1xf32>
    %c0_11 = arith.constant 0 : index
    %c0_12 = arith.constant 0 : index
    %21 = vector.load %arg6[%c0_11, %c0_12] : memref<96x1xf32, #tpu.memory_space<vmem>>, vector<96x1xf32>
    tpu.vector_store %arg6[%c0_11, %c0_12], %20 {strides = array<i32>} : memref<96x1xf32, #tpu.memory_space<vmem>>, vector<96x1xf32>,
    return
  }
  func.func @transform_0(%arg0: i32) -> (i32, i32) {
    %c0_i32 = arith.constant 0 : i32
    %c0_i32_0 = arith.constant 0 : i32
    return %arg0, %c0_i32 : i32, i32
  }
  func.func @transform_1(%arg0: i32) -> (i32, i32) {
    %c0_i32 = arith.constant 0 : i32
    %c0_i32_0 = arith.constant 0 : i32
    return %arg0, %c0_i32 : i32, i32
  }
  func.func @transform_2(%arg0: i32) -> (i32, i32) {
    %c0_i32 = arith.constant 0 : i32
    %c0_i32_0 = arith.constant 0 : i32
    return %arg0, %c0_i32 : i32, i32
  }
  func.func @transform_3(%arg0: i32) -> (i32, i32) {
    %c0_i32 = arith.constant 0 : i32
    %c0_i32_0 = arith.constant 0 : i32
    %c0_i32_1 = arith.constant 0 : i32
    return %c0_i32, %c0_i32_0 : i32, i32
  }
  func.func @transform_4(%arg0: i32) -> (i32, i32) {
    %c0_i32 = arith.constant 0 : i32
    %c0_i32_0 = arith.constant 0 : i32
    %c0_i32_1 = arith.constant 0 : i32
    return %c0_i32, %c0_i32_0 : i32, i32
  }
  func.func @transform_5(%arg0: i32) -> (i32, i32) {
    %c0_i32 = arith.constant 0 : i32
    %c0_i32_0 = arith.constant 0 : i32
    return %arg0, %c0_i32 : i32, i32
  }
}

</mosaic_0001>

<llo_original>
// kernel: tpu_custom_call.1
$region0: #{tpu_custom_call.1}
  #allocation0 [shape = 'u32[]', space=smem, size = 0x4, offset = 0x4, fixed_abs, tag = 'smem constant byte address 0x4 - core index']
  #allocation1 [shape = 'u32[144,128]{1,0:T(1,128)}', space=vmem, size = 0x12000, scoped, tag = 'internal scratch']
  %s0 = inlined_call_operand.vmem [shape: s32[288,1], index: 0, kind: input, shape index: {}]
  %s1 = inlined_call_operand.vmem [shape: s32[288,1], index: 1, kind: input, shape index: {}]
  %s2 = inlined_call_operand.vmem [shape: f32[288,1], index: 2, kind: input, shape index: {}]
  %s3 = inlined_call_operand.vmem [shape: f32[64,32], index: 3, kind: input, shape index: {}]
  %s4 = inlined_call_operand.vmem [shape: f32[80,32], index: 4, kind: input, shape index: {}]
  %s5 = inlined_call_operand.vmem [shape: f32[288,1], index: 5, kind: output, shape index: {}]
  %s6 = sld [smem:[#allocation0]]
  $region53: #{tpu_custom_call.1} parent=0
    _
  %s8 = ssub.s32 1, %s6
  %s9 = scalar_select 0, %s8, %s6
  loop: start=0, step=1, limit=5
  $region2: #{tpu_custom_call.1} parent=0 // loop_pre_header
    _
  $region3: #{tpu_custom_call.1} parent=0 // loop_header
    %s11 = sphi 0, %s15
    %p12 = scmp.ge.s32.totalorder %s11, 5
    %s21 = sphi 0, %s23
    %s24 = sphi 0, %s21
    %s25 = sphi 0, %s24
    %s41 = sphi 0, %s25
    %s47 = sphi 0, %s49
    %s50 = sphi 0, %s47
    %s51 = sphi 0, %s50
    %s67 = sphi 0, %s51
    %s73 = sphi 0, %s75
    %s76 = sphi 0, %s73
    %s77 = sphi 0, %s76
    %s93 = sphi 0, %s77
    %s97 = sphi 0, %s97
    %s99 = sphi 0, %s97
    %s100 = sphi 0, %s99
    %s114 = sphi 0, %s100
    %s118 = sphi 0, %s118
    %s120 = sphi 0, %s118
    %s121 = sphi 0, %s120
    %s135 = sphi 0, %s121
    %s141 = sphi 0, %s143
    %s144 = sphi 0, %s141
    %s145 = sphi 0, %s144
    %s161 = sphi 0, %s145
  $region4: #{tpu_custom_call.1} parent=0 // loop_header_branch
    %14 = sbr.rel (%p12) target = $region8
  $region5: #{tpu_custom_call.1} parent=0 // loop_body
    %s16 = ssub.s32 %s11, 1
    %s17 = ssub.s32 %s11, 2
    %s18 = sadd.s32 %s11, 1
    %s19 = ssub.s32 %s11, %s18
    %p20 = scmp.eq.s32.totalorder %s19, 0
    %s22 = sadd.s32 %s21, 1
    %s23 = scalar_select %p20, %s21, %s22
    %p26 = pneg %p20
    %p27 = scmp.eq.s32.totalorder %s11, 2
    %p28 = por %p26, %p27
    %p29 = scmp.ne.s32.totalorder %s21, %s24
    %p30 = scmp.eq.s32.totalorder %s11, 0
    %p31 = por %p29, %p30
    %p32 = scmp.ne.s32.totalorder %s21, %s24
    %p33 = scmp.eq.s32.totalorder %s16, 2
    %p34 = por %p32, %p33
    %p35 = scmp.ne.s32.totalorder %s24, %s25
    %p36 = scmp.eq.s32.totalorder %s16, 0
    %p37 = por %p35, %p36
    %p38 = scmp.ne.s32.totalorder %s24, %s25
    %p39 = scmp.eq.s32.totalorder %s17, 2
    %p40 = por %p38, %p39
    %p42 = scmp.ne.s32.totalorder %s25, %s41
    %p43 = scmp.eq.s32.totalorder %s17, 0
    %p44 = por %p42, %p43
    %s45 = ssub.s32 %s11, %s18
    %p46 = scmp.eq.s32.totalorder %s45, 0
    %s48 = sadd.s32 %s47, 1
    %s49 = scalar_select %p46, %s47, %s48
    %p52 = pneg %p46
    %p53 = scmp.eq.s32.totalorder %s11, 2
    %p54 = por %p52, %p53
    %p55 = scmp.ne.s32.totalorder %s47, %s50
    %p56 = scmp.eq.s32.totalorder %s11, 0
    %p57 = por %p55, %p56
    %p58 = scmp.ne.s32.totalorder %s47, %s50
    %p59 = scmp.eq.s32.totalorder %s16, 2
    %p60 = por %p58, %p59
    %p61 = scmp.ne.s32.totalorder %s50, %s51
    %p62 = scmp.eq.s32.totalorder %s16, 0
    %p63 = por %p61, %p62
    %p64 = scmp.ne.s32.totalorder %s50, %s51
    %p65 = scmp.eq.s32.totalorder %s17, 2
    %p66 = por %p64, %p65
    %p68 = scmp.ne.s32.totalorder %s51, %s67
    %p69 = scmp.eq.s32.totalorder %s17, 0
    %p70 = por %p68, %p69
    %s71 = ssub.s32 %s11, %s18
    %p72 = scmp.eq.s32.totalorder %s71, 0
    %s74 = sadd.s32 %s73, 1
    %s75 = scalar_select %p72, %s73, %s74
    %p78 = pneg %p72
    %p79 = scmp.eq.s32.totalorder %s11, 2
    %p80 = por %p78, %p79
    %p81 = scmp.ne.s32.totalorder %s73, %s76
    %p82 = scmp.eq.s32.totalorder %s11, 0
    %p83 = por %p81, %p82
    %p84 = scmp.ne.s32.totalorder %s73, %s76
    %p85 = scmp.eq.s32.totalorder %s16, 2
    %p86 = por %p84, %p85
    %p87 = scmp.ne.s32.totalorder %s76, %s77
    %p88 = scmp.eq.s32.totalorder %s16, 0
    %p89 = por %p87, %p88
    %p90 = scmp.ne.s32.totalorder %s76, %s77
    %p91 = scmp.eq.s32.totalorder %s17, 2
    %p92 = por %p90, %p91
    %p94 = scmp.ne.s32.totalorder %s77, %s93
    %p95 = scmp.eq.s32.totalorder %s17, 0
    %p96 = por %p94, %p95
    %s98 = sadd.s32 %s97, 1
    %p101 = scmp.eq.s32.totalorder %s11, 2
    %p102 = scmp.ne.s32.totalorder %s97, %s99
    %p103 = scmp.eq.s32.totalorder %s11, 0
    %p104 = por %p102, %p103
    %p105 = scmp.ne.s32.totalorder %s97, %s99
    %p106 = scmp.eq.s32.totalorder %s16, 2
    %p107 = por %p105, %p106
    %p108 = scmp.ne.s32.totalorder %s99, %s100
    %p109 = scmp.eq.s32.totalorder %s16, 0
    %p110 = por %p108, %p109
    %p111 = scmp.ne.s32.totalorder %s99, %s100
    %p112 = scmp.eq.s32.totalorder %s17, 2
    %p113 = por %p111, %p112
    %p115 = scmp.ne.s32.totalorder %s100, %s114
    %p116 = scmp.eq.s32.totalorder %s17, 0
    %p117 = por %p115, %p116
    %s119 = sadd.s32 %s118, 1
    %p122 = scmp.eq.s32.totalorder %s11, 2
    %p123 = scmp.ne.s32.totalorder %s118, %s120
    %p124 = scmp.eq.s32.totalorder %s11, 0
    %p125 = por %p123, %p124
    %p126 = scmp.ne.s32.totalorder %s118, %s120
    %p127 = scmp.eq.s32.totalorder %s16, 2
    %p128 = por %p126, %p127
    %p129 = scmp.ne.s32.totalorder %s120, %s121
    %p130 = scmp.eq.s32.totalorder %s16, 0
    %p131 = por %p129, %p130
    %p132 = scmp.ne.s32.totalorder %s120, %s121
    %p133 = scmp.eq.s32.totalorder %s17, 2
    %p134 = por %p132, %p133
    %p136 = scmp.ne.s32.totalorder %s121, %s135
    %p137 = scmp.eq.s32.totalorder %s17, 0
    %p138 = por %p136, %p137
    %s139 = ssub.s32 %s11, %s18
    %p140 = scmp.eq.s32.totalorder %s139, 0
    %s142 = sadd.s32 %s141, 1
    %s143 = scalar_select %p140, %s141, %s142
    %p146 = pneg %p140
    %p147 = scmp.eq.s32.totalorder %s11, 2
    %p148 = por %p146, %p147
    %p149 = scmp.ne.s32.totalorder %s141, %s144
    %p150 = scmp.eq.s32.totalorder %s11, 0
    %p151 = por %p149, %p150
    %p152 = scmp.ne.s32.totalorder %s141, %s144
    %p153 = scmp.eq.s32.totalorder %s16, 2
    %p154 = por %p152, %p153
    %p155 = scmp.ne.s32.totalorder %s144, %s145
    %p156 = scmp.eq.s32.totalorder %s16, 0
    %p157 = por %p155, %p156
    %p158 = scmp.ne.s32.totalorder %s144, %s145
    %p159 = scmp.eq.s32.totalorder %s17, 2
    %p160 = por %p158, %p159
    %p162 = scmp.ne.s32.totalorder %s145, %s161
    %p163 = scmp.eq.s32.totalorder %s17, 0
    %p164 = por %p162, %p163
    %p165 = scmp.le.s32.totalorder 1, %s11
    %p166 = scmp.lt.s32.totalorder %s11, 4
    %p167 = pnand %p165, %p166
    %p168 = pneg %p167
    // Predicated region
    $region9: #{tpu_custom_call.1} parent=5 // pred_check
      _
    $region10: #{tpu_custom_call.1} parent=5 // pred_check_branch
      %170 = sbr.rel (%p167) target = $region12
    $region11: #{tpu_custom_call.1} parent=5 // pred_region
      %s171 = ssub.s32 %s11, 1
      // Predicated region
      $region13: #{tpu_custom_call.1} parent=11 // pred_check
        %p172 = pneg %p110
      $region14: #{tpu_custom_call.1} parent=11 // pred_check_branch
        %174 = sbr.rel (%p172) target = $region16
      $region15: #{tpu_custom_call.1} parent=11 // pred_region
        _
      $region16: #{tpu_custom_call.1} parent=11 // pred_fallthru
        _
      // Predicated region
      $region17: #{tpu_custom_call.1} parent=11 // pred_check
        %p175 = pneg %p131
      $region18: #{tpu_custom_call.1} parent=11 // pred_check_branch
        %177 = sbr.rel (%p175) target = $region20
      $region19: #{tpu_custom_call.1} parent=11 // pred_region
        _
      $region20: #{tpu_custom_call.1} parent=11 // pred_fallthru
        _
    $region12: #{tpu_custom_call.1} parent=5 // pred_fallthru
      _
    %p178 = scmp.lt.s32.totalorder %s11, 3
    // Predicated region
    $region21: #{tpu_custom_call.1} parent=5 // pred_check
      %p179 = pneg %p178
    $region22: #{tpu_custom_call.1} parent=5 // pred_check_branch
      %181 = sbr.rel (%p179) target = $region24
    $region23: #{tpu_custom_call.1} parent=5 // pred_region
      // Predicated region
      $region25: #{tpu_custom_call.1} parent=23 // pred_check
        %p182 = pneg %p31
      $region26: #{tpu_custom_call.1} parent=23 // pred_check_branch
        %184 = sbr.rel (%p182) target = $region28
      $region27: #{tpu_custom_call.1} parent=23 // pred_region
        %s185 = smul.u32 12, %s11
        %p186 = scmp.lt.s32.totalorder %s185, 35
        %s187 = scalar_select %p186, %s185, 35
        %s188 = smul.addr %s187, 8
        %s189 = scalar_lea.vmem %s0, %s188
        %s190 = smul.u32 12, %s11
      $region28: #{tpu_custom_call.1} parent=23 // pred_fallthru
        _
      // Predicated region
      $region29: #{tpu_custom_call.1} parent=23 // pred_check
        %p191 = pneg %p57
      $region30: #{tpu_custom_call.1} parent=23 // pred_check_branch
        %193 = sbr.rel (%p191) target = $region32
      $region31: #{tpu_custom_call.1} parent=23 // pred_region
        %s194 = smul.u32 12, %s11
        %p195 = scmp.lt.s32.totalorder %s194, 35
        %s196 = scalar_select %p195, %s194, 35
        %s197 = smul.addr %s196, 8
        %s198 = scalar_lea.vmem %s1, %s197
        %s199 = smul.u32 12, %s11
      $region32: #{tpu_custom_call.1} parent=23 // pred_fallthru
        _
      // Predicated region
      $region33: #{tpu_custom_call.1} parent=23 // pred_check
        %p200 = pneg %p83
      $region34: #{tpu_custom_call.1} parent=23 // pred_check_branch
        %202 = sbr.rel (%p200) target = $region36
      $region35: #{tpu_custom_call.1} parent=23 // pred_region
        %s203 = smul.u32 12, %s11
        %p204 = scmp.lt.s32.totalorder %s203, 35
        %s205 = scalar_select %p204, %s203, 35
        %s206 = smul.addr %s205, 8
        %s207 = scalar_lea.vmem %s2, %s206
        %s208 = smul.u32 12, %s11
      $region36: #{tpu_custom_call.1} parent=23 // pred_fallthru
        _
    $region24: #{tpu_custom_call.1} parent=5 // pred_fallthru
      _
    %p209 = scmp.le.s32.totalorder 1, %s11
    %p210 = scmp.lt.s32.totalorder %s11, 4
    %p211 = pnand %p209, %p210
    %p212 = pneg %p211
    // Predicated region
    $region37: #{tpu_custom_call.1} parent=5 // pred_check
      _
    $region38: #{tpu_custom_call.1} parent=5 // pred_check_branch
      %214 = sbr.rel (%p211) target = $region40
    $region39: #{tpu_custom_call.1} parent=5 // pred_region
      %s215 = ssub.s32 %s11, 1
      %s216 = smul.u32 12, %s16
      %p217 = scmp.lt.s32.totalorder %s216, 35
      %s218 = scalar_select %p217, %s216, 35
      %s219 = smul.addr %s218, 8
      %s220 = scalar_lea.vmem %s0, %s219
      %p221 = pneg %p37
      %p222 = pneg %p34
      %s223 = smul.u32 12, %s16
      %p224 = scmp.lt.s32.totalorder %s223, 35
      %s225 = scalar_select %p224, %s223, 35
      %s226 = smul.addr %s225, 8
      %s227 = scalar_lea.vmem %s1, %s226
      %p228 = pneg %p63
      %p229 = pneg %p60
      %s230 = smul.u32 12, %s16
      %p231 = scmp.lt.s32.totalorder %s230, 35
      %s232 = scalar_select %p231, %s230, 35
      %s233 = smul.addr %s232, 8
      %s234 = scalar_lea.vmem %s2, %s233
      %p235 = pneg %p89
      %p236 = pneg %p86
      %p237 = pneg %p110
      %p238 = pneg %p107
      %p239 = pneg %p131
      %p240 = pneg %p128
      %p241 = pneg %p157
      %p242 = pneg %p154
      %s243 = smul.u32 12, %s16
      %p244 = scmp.lt.s32.totalorder %s243, 35
      %s245 = scalar_select %p244, %s243, 35
      %s246 = smul.addr %s245, 8
      %s247 = scalar_lea.vmem %s5, %s246
      %s248 = smul.u32 12, %s16
      %p249 = scmp.lt.s32.totalorder %s248, 35
      %s250 = scalar_select %p249, %s248, 35
      %s251 = smul.addr %s250, 8
      %s252 = scalar_lea.vmem %s0, %s251
      %s253 = smul.u32 12, %s16
      %s254 = smul.u32 12, %s16
      %p255 = scmp.lt.s32.totalorder %s254, 35
      %s256 = scalar_select %p255, %s254, 35
      %s257 = smul.addr %s256, 8
      %s258 = scalar_lea.vmem %s1, %s257
      %s259 = smul.u32 12, %s16
      %s260 = smul.u32 12, %s16
      %p261 = scmp.lt.s32.totalorder %s260, 35
      %s262 = scalar_select %p261, %s260, 35
      %s263 = smul.addr %s262, 8
      %s264 = scalar_lea.vmem %s2, %s263
      %s265 = smul.u32 12, %s16
      %s266 = smul.u32 12, %s16
      %p267 = scmp.lt.s32.totalorder %s266, 35
      %s268 = scalar_select %p267, %s266, 35
      %s269 = smul.addr %s268, 8
      %s270 = scalar_lea.vmem %s5, %s269
      %s271 = smul.u32 12, %s16
      %v272 = vld [vmem:[%s252] sm:$0xff]
      %v273 = vld [vmem:[%s252 + $0x8] sm:$0xff]
      %v274 = vld [vmem:[%s252 + $0x10] sm:$0xff]
      %v275 = vld [vmem:[%s252 + $0x18] sm:$0xff]
      %v276 = vld [vmem:[%s252 + $0x20] sm:$0xff]
      %v277 = vld [vmem:[%s252 + $0x28] sm:$0xff]
      %v278 = vld [vmem:[%s252 + $0x30] sm:$0xff]
      %v279 = vld [vmem:[%s252 + $0x38] sm:$0xff]
      %v280 = vld [vmem:[%s252 + $0x40] sm:$0xff]
      %v281 = vld [vmem:[%s252 + $0x48] sm:$0xff]
      %v282 = vld [vmem:[%s252 + $0x50] sm:$0xff]
      %v283 = vld [vmem:[%s252 + $0x58] sm:$0xff]
      %v284 = vld [vmem:[%s258] sm:$0xff]
      %v285 = vld [vmem:[%s258 + $0x8] sm:$0xff]
      %v286 = vld [vmem:[%s258 + $0x10] sm:$0xff]
      %v287 = vld [vmem:[%s258 + $0x18] sm:$0xff]
      %v288 = vld [vmem:[%s258 + $0x20] sm:$0xff]
      %v289 = vld [vmem:[%s258 + $0x28] sm:$0xff]
      %v290 = vld [vmem:[%s258 + $0x30] sm:$0xff]
      %v291 = vld [vmem:[%s258 + $0x38] sm:$0xff]
      %v292 = vld [vmem:[%s258 + $0x40] sm:$0xff]
      %v293 = vld [vmem:[%s258 + $0x48] sm:$0xff]
      %v294 = vld [vmem:[%s258 + $0x50] sm:$0xff]
      %v295 = vld [vmem:[%s258 + $0x58] sm:$0xff]
      %v296 = vlaneseq
      %v297 = vand.u32 %v296, 127
      %298 = vset.pattern.permute.xlu0 0
      %299 = vperm.xlu0 %298, %v272
      %v300 = vpop.permute.xlu0 %299
      %301 = vset.pattern.permute.xlu0 0
      %302 = vperm.xlu0 %301, %v273
      %v303 = vpop.permute.xlu0 %302
      %304 = vset.pattern.permute.xlu0 0
      %305 = vperm.xlu0 %304, %v274
      %v306 = vpop.permute.xlu0 %305
      %307 = vset.pattern.permute.xlu0 0
      %308 = vperm.xlu0 %307, %v275
      %v309 = vpop.permute.xlu0 %308
      %310 = vset.pattern.permute.xlu0 0
      %311 = vperm.xlu0 %310, %v276
      %v312 = vpop.permute.xlu0 %311
      %313 = vset.pattern.permute.xlu0 0
      %314 = vperm.xlu0 %313, %v277
      %v315 = vpop.permute.xlu0 %314
      %316 = vset.pattern.permute.xlu0 0
      %317 = vperm.xlu0 %316, %v278
      %v318 = vpop.permute.xlu0 %317
      %319 = vset.pattern.permute.xlu0 0
      %320 = vperm.xlu0 %319, %v279
      %v321 = vpop.permute.xlu0 %320
      %322 = vset.pattern.permute.xlu0 0
      %323 = vperm.xlu0 %322, %v280
      %v324 = vpop.permute.xlu0 %323
      %325 = vset.pattern.permute.xlu0 0
      %326 = vperm.xlu0 %325, %v281
      %v327 = vpop.permute.xlu0 %326
      %328 = vset.pattern.permute.xlu0 0
      %329 = vperm.xlu0 %328, %v282
      %v330 = vpop.permute.xlu0 %329
      %331 = vset.pattern.permute.xlu0 0
      %332 = vperm.xlu0 %331, %v283
      %v333 = vpop.permute.xlu0 %332
      %vm334 = vcmp.eq.s32.totalorder %v297, %v300
      %vm335 = vcmp.eq.s32.totalorder %v297, %v303
      %vm336 = vcmp.eq.s32.totalorder %v297, %v306
      %vm337 = vcmp.eq.s32.totalorder %v297, %v309
      %vm338 = vcmp.eq.s32.totalorder %v297, %v312
      %vm339 = vcmp.eq.s32.totalorder %v297, %v315
      %vm340 = vcmp.eq.s32.totalorder %v297, %v318
      %vm341 = vcmp.eq.s32.totalorder %v297, %v321
      %vm342 = vcmp.eq.s32.totalorder %v297, %v324
      %vm343 = vcmp.eq.s32.totalorder %v297, %v327
      %vm344 = vcmp.eq.s32.totalorder %v297, %v330
      %vm345 = vcmp.eq.s32.totalorder %v297, %v333
      %346 = vset.pattern.permute.xlu0 0
      %347 = vperm.xlu0 %346, %v284
      %v348 = vpop.permute.xlu0 %347
      %349 = vset.pattern.permute.xlu0 0
      %350 = vperm.xlu0 %349, %v285
      %v351 = vpop.permute.xlu0 %350
      %352 = vset.pattern.permute.xlu0 0
      %353 = vperm.xlu0 %352, %v286
      %v354 = vpop.permute.xlu0 %353
      %355 = vset.pattern.permute.xlu0 0
      %356 = vperm.xlu0 %355, %v287
      %v357 = vpop.permute.xlu0 %356
      %358 = vset.pattern.permute.xlu0 0
      %359 = vperm.xlu0 %358, %v288
      %v360 = vpop.permute.xlu0 %359
      %361 = vset.pattern.permute.xlu0 0
      %362 = vperm.xlu0 %361, %v289
      %v363 = vpop.permute.xlu0 %362
      %364 = vset.pattern.permute.xlu0 0
      %365 = vperm.xlu0 %364, %v290
      %v366 = vpop.permute.xlu0 %365
      %367 = vset.pattern.permute.xlu0 0
      %368 = vperm.xlu0 %367, %v291
      %v369 = vpop.permute.xlu0 %368
      %370 = vset.pattern.permute.xlu0 0
      %371 = vperm.xlu0 %370, %v292
      %v372 = vpop.permute.xlu0 %371
      %373 = vset.pattern.permute.xlu0 0
      %374 = vperm.xlu0 %373, %v293
      %v375 = vpop.permute.xlu0 %374
      %376 = vset.pattern.permute.xlu0 0
      %377 = vperm.xlu0 %376, %v294
      %v378 = vpop.permute.xlu0 %377
      %379 = vset.pattern.permute.xlu0 0
      %380 = vperm.xlu0 %379, %v295
      %v381 = vpop.permute.xlu0 %380
      %vm382 = vcmp.eq.s32.totalorder %v297, %v348
      %vm383 = vcmp.eq.s32.totalorder %v297, %v351
      %vm384 = vcmp.eq.s32.totalorder %v297, %v354
      %vm385 = vcmp.eq.s32.totalorder %v297, %v357
      %vm386 = vcmp.eq.s32.totalorder %v297, %v360
      %vm387 = vcmp.eq.s32.totalorder %v297, %v363
      %vm388 = vcmp.eq.s32.totalorder %v297, %v366
      %vm389 = vcmp.eq.s32.totalorder %v297, %v369
      %vm390 = vcmp.eq.s32.totalorder %v297, %v372
      %vm391 = vcmp.eq.s32.totalorder %v297, %v375
      %vm392 = vcmp.eq.s32.totalorder %v297, %v378
      %vm393 = vcmp.eq.s32.totalorder %v297, %v381
      %v394 = vsel %vm334, 1, 0
      %v395 = vsel %vm335, 1, 0
      %v396 = vsel %vm336, 1, 0
      %v397 = vsel %vm337, 1, 0
      %v398 = vsel %vm338, 1, 0
      %v399 = vsel %vm339, 1, 0
      %v400 = vsel %vm340, 1, 0
      %v401 = vsel %vm341, 1, 0
      %v402 = vsel %vm342, 1, 0
      %v403 = vsel %vm343, 1, 0
      %v404 = vsel %vm344, 1, 0
      %v405 = vsel %vm345, 1, 0
      %v406 = vcvt.s32.f32 %v394
      %v407 = vcvt.s32.f32 %v395
      %v408 = vcvt.s32.f32 %v396
      %v409 = vcvt.s32.f32 %v397
      %v410 = vcvt.s32.f32 %v398
      %v411 = vcvt.s32.f32 %v399
      %v412 = vcvt.s32.f32 %v400
      %v413 = vcvt.s32.f32 %v401
      %v414 = vcvt.s32.f32 %v402
      %v415 = vcvt.s32.f32 %v403
      %v416 = vcvt.s32.f32 %v404
      %v417 = vcvt.s32.f32 %v405
      %v418 = vld [vmem:[%s3] sm:$0xff]
      %v419 = vld [vmem:[%s3 + $0x8] sm:$0xff]
      %v420 = vld [vmem:[%s3 + $0x10] sm:$0xff]
      %v421 = vld [vmem:[%s3 + $0x18] sm:$0xff]
      %v422 = vld [vmem:[%s3 + $0x20] sm:$0xff]
      %v423 = vld [vmem:[%s3 + $0x28] sm:$0xff]
      %v424 = vld [vmem:[%s3 + $0x30] sm:$0xff]
      %v425 = vld [vmem:[%s3 + $0x38] sm:$0xff]
      %vm426 = vcmask 523264
      %v428 = vsel %vm426, %v406, 0
      %v431 = vsel %vm426, %v407, 0
      %v434 = vsel %vm426, %v408, 0
      %v437 = vsel %vm426, %v409, 0
      %v440 = vsel %vm426, %v410, 0
      %v443 = vsel %vm426, %v411, 0
      %v446 = vsel %vm426, %v412, 0
      %v449 = vsel %vm426, %v413, 0
      %v452 = vsel %vm426, %v414, 0
      %v455 = vsel %vm426, %v415, 0
      %v458 = vsel %vm426, %v416, 0
      %v461 = vsel %vm426, %v417, 0
      %463 = vmatprep.subr.mxu0 0.0
      %464 = vmatpush1.msra.mxu0 %v418
      %465 = vmatprep.subr.mxu0 0.0
      %466 = vmatpush1.msra.mxu0 %v419
      %467 = vmatprep.subr.mxu0 0.0
      %468 = vmatpush1.msra.mxu0 %v420
      %469 = vmatprep.subr.mxu0 0.0
      %470 = vmatpush1.msra.mxu0 %v421
      %471 = vmatprep.subr.mxu0 0.0
      %472 = vmatpush1.msra.mxu0 %v422
      %473 = vmatprep.subr.mxu0 0.0
      %474 = vmatpush1.msra.mxu0 %v423
      %475 = vmatprep.subr.mxu0 0.0
      %476 = vmatpush1.msra.mxu0 %v424
      %477 = vmatprep.subr.mxu0 0.0
      %478 = vmatpush1.msra.mxu0 %v425
      %479 = vmatprep.subr.mxu0 0.0
      %480 = vmatpush1.msra.mxu0 0.0
      %481 = vmatprep.subr.mxu0 0.0
      %482 = vmatpush1.msra.mxu0 0.0
      %483 = vmatprep.subr.mxu0 0.0
      %484 = vmatpush1.msra.mxu0 0.0
      %485 = vmatprep.subr.mxu0 0.0
      %486 = vmatpush1.msra.mxu0 0.0
      %487 = vmatprep.subr.mxu0 0.0
      %488 = vmatpush1.msra.mxu0 0.0
      %489 = vmatprep.subr.mxu0 0.0
      %490 = vmatpush1.msra.mxu0 0.0
      %491 = vmatprep.subr.mxu0 0.0
      %492 = vmatpush1.msra.mxu0 0.0
      %493 = vmatprep.subr.mxu0 0.0
      %494 = vmatpush1.msra.mxu0 0.0
      %495 = vmatprep.subr.mxu0 0.0
      %496 = vmatpush1.msra.mxu0 0.0
      %497 = vmatprep.subr.mxu0 0.0
      %498 = vmatpush1.msra.mxu0 0.0
      %499 = vmatprep.subr.mxu0 0.0
      %500 = vmatpush1.msra.mxu0 0.0
      %501 = vmatprep.subr.mxu0 0.0
      %502 = vmatpush1.msra.mxu0 0.0
      %503 = vmatprep.subr.mxu0 0.0
      %504 = vmatpush1.msra.mxu0 0.0
      %505 = vmatprep.subr.mxu0 0.0
      %506 = vmatpush1.msra.mxu0 0.0
      %507 = vmatprep.subr.mxu0 0.0
      %508 = vmatpush1.msra.mxu0 0.0
      %509 = vmatprep.subr.mxu0 0.0
      %510 = vmatpush1.msra.mxu0 0.0
      %511 = vmatprep.subr.mxu0 0.0
      %512 = vmatpush1.msra.mxu0 0.0
      %513 = vmatprep.subr.mxu0 0.0
      %514 = vmatpush1.msra.mxu0 0.0
      %515 = vmatprep.subr.mxu0 0.0
      %516 = vmatpush1.msra.mxu0 0.0
      %517 = vmatprep.subr.mxu0 0.0
      %518 = vmatpush1.msra.mxu0 0.0
      %519 = vmatprep.subr.mxu0 0.0
      %520 = vmatpush1.msra.mxu0 0.0
      %521 = vmatprep.subr.mxu0 0.0
      %522 = vmatpush1.msra.mxu0 0.0
      %523 = vmatprep.subr.mxu0 0.0
      %524 = vmatpush1.msra.mxu0 0.0
      %525 = vmatprep.subr.mxu0 0.0
      %526 = vmatpush1.msra.mxu0 0.0
      %527 = vmatprep.mubr.f32.mxu0 0.0
      %528 = vmatmul.mubr.f32.gmra.mrb[0].mxu0 %v428
      %v529 = vpop.f32.mrb[0].mxu0
      %v530 = vadd.f32 0.0, %v529
      %v531 = vpop.f32.mrb[0].mxu0
      %532 = vmatprep.mubr.f32.mxu0 0.0
      %533 = vmatmul.mubr.f32.gmra.mrb[0].mxu0 %v431
      %v534 = vpop.f32.mrb[0].mxu0
      %v535 = vadd.f32 0.0, %v534
      %v536 = vpop.f32.mrb[0].mxu0
      %537 = vmatprep.mubr.f32.mxu0 0.0
      %538 = vmatmul.mubr.f32.gmra.mrb[0].mxu0 %v434
      %v539 = vpop.f32.mrb[0].mxu0
      %v540 = vadd.f32 0.0, %v539
      %v541 = vpop.f32.mrb[0].mxu0
      %542 = vmatprep.mubr.f32.mxu0 0.0
      %543 = vmatmul.mubr.f32.gmra.mrb[0].mxu0 %v437
      %v544 = vpop.f32.mrb[0].mxu0
      %v545 = vadd.f32 0.0, %v544
      %v546 = vpop.f32.mrb[0].mxu0
      %547 = vmatprep.mubr.f32.mxu0 0.0
      %548 = vmatmul.mubr.f32.gmra.mrb[0].mxu0 %v440
      %v549 = vpop.f32.mrb[0].mxu0
      %v550 = vadd.f32 0.0, %v549
      %v551 = vpop.f32.mrb[0].mxu0
      %552 = vmatprep.mubr.f32.mxu0 0.0
      %553 = vmatmul.mubr.f32.gmra.mrb[0].mxu0 %v443
      %v554 = vpop.f32.mrb[0].mxu0
      %v555 = vadd.f32 0.0, %v554
      %v556 = vpop.f32.mrb[0].mxu0
      %557 = vmatprep.mubr.f32.mxu0 0.0
      %558 = vmatmul.mubr.f32.gmra.mrb[0].mxu0 %v446
      %v559 = vpop.f32.mrb[0].mxu0
      %v560 = vadd.f32 0.0, %v559
      %v561 = vpop.f32.mrb[0].mxu0
      %562 = vmatprep.mubr.f32.mxu0 0.0
      %563 = vmatmul.mubr.f32.gmra.mrb[0].mxu0 %v449
      %v564 = vpop.f32.mrb[0].mxu0
      %v565 = vadd.f32 0.0, %v564
      %v566 = vpop.f32.mrb[0].mxu0
      %567 = vmatprep.mubr.f32.mxu0 0.0
      %568 = vmatmul.mubr.f32.gmra.mrb[0].mxu0 %v452
      %v569 = vpop.f32.mrb[0].mxu0
      %v570 = vadd.f32 0.0, %v569
      %v571 = vpop.f32.mrb[0].mxu0
      %572 = vmatprep.mubr.f32.mxu0 0.0
      %573 = vmatmul.mubr.f32.gmra.mrb[0].mxu0 %v455
      %v574 = vpop.f32.mrb[0].mxu0
      %v575 = vadd.f32 0.0, %v574
      %v576 = vpop.f32.mrb[0].mxu0
      %577 = vmatprep.mubr.f32.mxu0 0.0
      %578 = vmatmul.mubr.f32.gmra.mrb[0].mxu0 %v458
      %v579 = vpop.f32.mrb[0].mxu0
      %v580 = vadd.f32 0.0, %v579
      %v581 = vpop.f32.mrb[0].mxu0
      %582 = vmatprep.mubr.f32.mxu0 0.0
      %583 = vmatmul.mubr.f32.gmra.mrb[0].mxu0 %v461
      %v584 = vpop.f32.mrb[0].mxu0
      %v585 = vadd.f32 0.0, %v584
      %v586 = vpop.f32.mrb[0].mxu0
      %587 = vdwg.mxu0
      %v588 = vsel %vm382, 1, 0
      %v589 = vsel %vm383, 1, 0
      %v590 = vsel %vm384, 1, 0
      %v591 = vsel %vm385, 1, 0
      %v592 = vsel %vm386, 1, 0
      %v593 = vsel %vm387, 1, 0
      %v594 = vsel %vm388, 1, 0
      %v595 = vsel %vm389, 1, 0
      %v596 = vsel %vm390, 1, 0
      %v597 = vsel %vm391, 1, 0
      %v598 = vsel %vm392, 1, 0
      %v599 = vsel %vm393, 1, 0
      %v600 = vcvt.s32.f32 %v588
      %v601 = vcvt.s32.f32 %v589
      %v602 = vcvt.s32.f32 %v590
      %v603 = vcvt.s32.f32 %v591
      %v604 = vcvt.s32.f32 %v592
      %v605 = vcvt.s32.f32 %v593
      %v606 = vcvt.s32.f32 %v594
      %v607 = vcvt.s32.f32 %v595
      %v608 = vcvt.s32.f32 %v596
      %v609 = vcvt.s32.f32 %v597
      %v610 = vcvt.s32.f32 %v598
      %v611 = vcvt.s32.f32 %v599
      %v612 = vld [vmem:[%s4] sm:$0xff]
      %v613 = vld [vmem:[%s4 + $0x8] sm:$0xff]
      %v614 = vld [vmem:[%s4 + $0x10] sm:$0xff]
      %v615 = vld [vmem:[%s4 + $0x18] sm:$0xff]
      %v616 = vld [vmem:[%s4 + $0x20] sm:$0xff]
      %v617 = vld [vmem:[%s4 + $0x28] sm:$0xff]
      %v618 = vld [vmem:[%s4 + $0x30] sm:$0xff]
      %v619 = vld [vmem:[%s4 + $0x38] sm:$0xff]
      %v620 = vld [vmem:[%s4 + $0x40] sm:$0xff]
      %v621 = vld [vmem:[%s4 + $0x48] sm:$0xff]
      %vm622 = vcmask 654336
      %v624 = vsel %vm622, %v600, 0
      %v627 = vsel %vm622, %v601, 0
      %v630 = vsel %vm622, %v602, 0
      %v633 = vsel %vm622, %v603, 0
      %v636 = vsel %vm622, %v604, 0
      %v639 = vsel %vm622, %v605, 0
      %v642 = vsel %vm622, %v606, 0
      %v645 = vsel %vm622, %v607, 0
      %v648 = vsel %vm622, %v608, 0
      %v651 = vsel %vm622, %v609, 0
      %v654 = vsel %vm622, %v610, 0
      %v657 = vsel %vm622, %v611, 0
      %659 = vmatprep.subr.mxu0 0.0
      %660 = vmatpush1.msra.mxu0 %v612
      %661 = vmatprep.subr.mxu0 0.0
      %662 = vmatpush1.msra.mxu0 %v613
      %663 = vmatprep.subr.mxu0 0.0
      %664 = vmatpush1.msra.mxu0 %v614
      %665 = vmatprep.subr.mxu0 0.0
      %666 = vmatpush1.msra.mxu0 %v615
      %667 = vmatprep.subr.mxu0 0.0
      %668 = vmatpush1.msra.mxu0 %v616
      %669 = vmatprep.subr.mxu0 0.0
      %670 = vmatpush1.msra.mxu0 %v617
      %671 = vmatprep.subr.mxu0 0.0
      %672 = vmatpush1.msra.mxu0 %v618
      %673 = vmatprep.subr.mxu0 0.0
      %674 = vmatpush1.msra.mxu0 %v619
      %675 = vmatprep.subr.mxu0 0.0
      %676 = vmatpush1.msra.mxu0 %v620
      %677 = vmatprep.subr.mxu0 0.0
      %678 = vmatpush1.msra.mxu0 %v621
      %679 = vmatprep.subr.mxu0 0.0
      %680 = vmatpush1.msra.mxu0 0.0
      %681 = vmatprep.subr.mxu0 0.0
      %682 = vmatpush1.msra.mxu0 0.0
      %683 = vmatprep.subr.mxu0 0.0
      %684 = vmatpush1.msra.mxu0 0.0
      %685 = vmatprep.subr.mxu0 0.0
      %686 = vmatpush1.msra.mxu0 0.0
      %687 = vmatprep.subr.mxu0 0.0
      %688 = vmatpush1.msra.mxu0 0.0
      %689 = vmatprep.subr.mxu0 0.0
      %690 = vmatpush1.msra.mxu0 0.0
      %691 = vmatprep.subr.mxu0 0.0
      %692 = vmatpush1.msra.mxu0 0.0
      %693 = vmatprep.subr.mxu0 0.0
      %694 = vmatpush1.msra.mxu0 0.0
      %695 = vmatprep.subr.mxu0 0.0
      %696 = vmatpush1.msra.mxu0 0.0
      %697 = vmatprep.subr.mxu0 0.0
      %698 = vmatpush1.msra.mxu0 0.0
      %699 = vmatprep.subr.mxu0 0.0
      %700 = vmatpush1.msra.mxu0 0.0
      %701 = vmatprep.subr.mxu0 0.0
      %702 = vmatpush1.msra.mxu0 0.0
      %703 = vmatprep.subr.mxu0 0.0
      %704 = vmatpush1.msra.mxu0 0.0
      %705 = vmatprep.subr.mxu0 0.0
      %706 = vmatpush1.msra.mxu0 0.0
      %707 = vmatprep.subr.mxu0 0.0
      %708 = vmatpush1.msra.mxu0 0.0
      %709 = vmatprep.subr.mxu0 0.0
      %710 = vmatpush1.msra.mxu0 0.0
      %711 = vmatprep.subr.mxu0 0.0
      %712 = vmatpush1.msra.mxu0 0.0
      %713 = vmatprep.subr.mxu0 0.0
      %714 = vmatpush1.msra.mxu0 0.0
      %715 = vmatprep.subr.mxu0 0.0
      %716 = vmatpush1.msra.mxu0 0.0
      %717 = vmatprep.subr.mxu0 0.0
      %718 = vmatpush1.msra.mxu0 0.0
      %719 = vmatprep.subr.mxu0 0.0
      %720 = vmatpush1.msra.mxu0 0.0
      %721 = vmatprep.subr.mxu0 0.0
      %722 = vmatpush1.msra.mxu0 0.0
      %723 = vmatprep.mubr.f32.mxu0 0.0
      %724 = vmatmul.mubr.f32.gmra.mrb[0].mxu0 %v624
      %v725 = vpop.f32.mrb[0].mxu0
      %v726 = vadd.f32 0.0, %v725
      %v727 = vpop.f32.mrb[0].mxu0
      %728 = vmatprep.mubr.f32.mxu0 0.0
      %729 = vmatmul.mubr.f32.gmra.mrb[0].mxu0 %v627
      %v730 = vpop.f32.mrb[0].mxu0
      %v731 = vadd.f32 0.0, %v730
      %v732 = vpop.f32.mrb[0].mxu0
      %733 = vmatprep.mubr.f32.mxu0 0.0
      %734 = vmatmul.mubr.f32.gmra.mrb[0].mxu0 %v630
      %v735 = vpop.f32.mrb[0].mxu0
      %v736 = vadd.f32 0.0, %v735
      %v737 = vpop.f32.mrb[0].mxu0
      %738 = vmatprep.mubr.f32.mxu0 0.0
      %739 = vmatmul.mubr.f32.gmra.mrb[0].mxu0 %v633
      %v740 = vpop.f32.mrb[0].mxu0
      %v741 = vadd.f32 0.0, %v740
      %v742 = vpop.f32.mrb[0].mxu0
      %743 = vmatprep.mubr.f32.mxu0 0.0
      %744 = vmatmul.mubr.f32.gmra.mrb[0].mxu0 %v636
      %v745 = vpop.f32.mrb[0].mxu0
      %v746 = vadd.f32 0.0, %v745
      %v747 = vpop.f32.mrb[0].mxu0
      %748 = vmatprep.mubr.f32.mxu0 0.0
      %749 = vmatmul.mubr.f32.gmra.mrb[0].mxu0 %v639
      %v750 = vpop.f32.mrb[0].mxu0
      %v751 = vadd.f32 0.0, %v750
      %v752 = vpop.f32.mrb[0].mxu0
      %753 = vmatprep.mubr.f32.mxu0 0.0
      %754 = vmatmul.mubr.f32.gmra.mrb[0].mxu0 %v642
      %v755 = vpop.f32.mrb[0].mxu0
      %v756 = vadd.f32 0.0, %v755
      %v757 = vpop.f32.mrb[0].mxu0
      %758 = vmatprep.mubr.f32.mxu0 0.0
      %759 = vmatmul.mubr.f32.gmra.mrb[0].mxu0 %v645
      %v760 = vpop.f32.mrb[0].mxu0
      %v761 = vadd.f32 0.0, %v760
      %v762 = vpop.f32.mrb[0].mxu0
      %763 = vmatprep.mubr.f32.mxu0 0.0
      %764 = vmatmul.mubr.f32.gmra.mrb[0].mxu0 %v648
      %v765 = vpop.f32.mrb[0].mxu0
      %v766 = vadd.f32 0.0, %v765
      %v767 = vpop.f32.mrb[0].mxu0
      %768 = vmatprep.mubr.f32.mxu0 0.0
      %769 = vmatmul.mubr.f32.gmra.mrb[0].mxu0 %v651
      %v770 = vpop.f32.mrb[0].mxu0
      %v771 = vadd.f32 0.0, %v770
      %v772 = vpop.f32.mrb[0].mxu0
      %773 = vmatprep.mubr.f32.mxu0 0.0
      %774 = vmatmul.mubr.f32.gmra.mrb[0].mxu0 %v654
      %v775 = vpop.f32.mrb[0].mxu0
      %v776 = vadd.f32 0.0, %v775
      %v777 = vpop.f32.mrb[0].mxu0
      %778 = vmatprep.mubr.f32.mxu0 0.0
      %779 = vmatmul.mubr.f32.gmra.mrb[0].mxu0 %v657
      %v780 = vpop.f32.mrb[0].mxu0
      %v781 = vadd.f32 0.0, %v780
      %v782 = vpop.f32.mrb[0].mxu0
      %783 = vdwg.mxu0
      %v784 = vmul.f32 %v530, %v726
      %v785 = vmul.f32 %v535, %v731
      %v786 = vmul.f32 %v540, %v736
      %v787 = vmul.f32 %v545, %v741
      %v788 = vmul.f32 %v550, %v746
      %v789 = vmul.f32 %v555, %v751
      %v790 = vmul.f32 %v560, %v756
      %v791 = vmul.f32 %v565, %v761
      %v792 = vmul.f32 %v570, %v766
      %v793 = vmul.f32 %v575, %v771
      %v794 = vmul.f32 %v580, %v776
      %v795 = vmul.f32 %v585, %v781
      %vm796 = vcmask 261120
      %v797 = vsel %vm796, %v784, 0.0
      %798 = vadd.xlane.f32.xlu0 %v797
      %v799 = vpop.xlane.xlu0 %798
      %v800 = vsel %vm796, %v785, 0.0
      %801 = vadd.xlane.f32.xlu0 %v800
      %v802 = vpop.xlane.xlu0 %801
      %v803 = vsel %vm796, %v786, 0.0
      %804 = vadd.xlane.f32.xlu0 %v803
      %v805 = vpop.xlane.xlu0 %804
      %v806 = vsel %vm796, %v787, 0.0
      %807 = vadd.xlane.f32.xlu0 %v806
      %v808 = vpop.xlane.xlu0 %807
      %v809 = vsel %vm796, %v788, 0.0
      %810 = vadd.xlane.f32.xlu0 %v809
      %v811 = vpop.xlane.xlu0 %810
      %v812 = vsel %vm796, %v789, 0.0
      %813 = vadd.xlane.f32.xlu0 %v812
      %v814 = vpop.xlane.xlu0 %813
      %v815 = vsel %vm796, %v790, 0.0
      %816 = vadd.xlane.f32.xlu0 %v815
      %v817 = vpop.xlane.xlu0 %816
      %v818 = vsel %vm796, %v791, 0.0
      %819 = vadd.xlane.f32.xlu0 %v818
      %v820 = vpop.xlane.xlu0 %819
      %v821 = vsel %vm796, %v792, 0.0
      %822 = vadd.xlane.f32.xlu0 %v821
      %v823 = vpop.xlane.xlu0 %822
      %v824 = vsel %vm796, %v793, 0.0
      %825 = vadd.xlane.f32.xlu0 %v824
      %v826 = vpop.xlane.xlu0 %825
      %v827 = vsel %vm796, %v794, 0.0
      %828 = vadd.xlane.f32.xlu0 %v827
      %v829 = vpop.xlane.xlu0 %828
      %v830 = vsel %vm796, %v795, 0.0
      %831 = vadd.xlane.f32.xlu0 %v830
      %v832 = vpop.xlane.xlu0 %831
      %v833 = vld [vmem:[%s264] sm:$0xff]
      %v834 = vld [vmem:[%s264 + $0x8] sm:$0xff]
      %v835 = vld [vmem:[%s264 + $0x10] sm:$0xff]
      %v836 = vld [vmem:[%s264 + $0x18] sm:$0xff]
      %v837 = vld [vmem:[%s264 + $0x20] sm:$0xff]
      %v838 = vld [vmem:[%s264 + $0x28] sm:$0xff]
      %v839 = vld [vmem:[%s264 + $0x30] sm:$0xff]
      %v840 = vld [vmem:[%s264 + $0x38] sm:$0xff]
      %v841 = vld [vmem:[%s264 + $0x40] sm:$0xff]
      %v842 = vld [vmem:[%s264 + $0x48] sm:$0xff]
      %v843 = vld [vmem:[%s264 + $0x50] sm:$0xff]
      %v844 = vld [vmem:[%s264 + $0x58] sm:$0xff]
      %v845 = vadd.f32 %v833, %v799
      %v846 = vadd.f32 %v834, %v802
      %v847 = vadd.f32 %v835, %v805
      %v848 = vadd.f32 %v836, %v808
      %v849 = vadd.f32 %v837, %v811
      %v850 = vadd.f32 %v838, %v814
      %v851 = vadd.f32 %v839, %v817
      %v852 = vadd.f32 %v840, %v820
      %v853 = vadd.f32 %v841, %v823
      %v854 = vadd.f32 %v842, %v826
      %v855 = vadd.f32 %v843, %v829
      %v856 = vadd.f32 %v844, %v832
      %vm857 = vcmask 7168
      %858 = vst.msk [vmem:[%s270] sm:$0xff] %vm857, %v845
      %859 = vst.msk [vmem:[%s270 + $0x8] sm:$0xff] %vm857, %v846
      %860 = vst.msk [vmem:[%s270 + $0x10] sm:$0xff] %vm857, %v847
      %861 = vst.msk [vmem:[%s270 + $0x18] sm:$0xff] %vm857, %v848
      %862 = vst.msk [vmem:[%s270 + $0x20] sm:$0xff] %vm857, %v849
      %863 = vst.msk [vmem:[%s270 + $0x28] sm:$0xff] %vm857, %v850
      %864 = vst.msk [vmem:[%s270 + $0x30] sm:$0xff] %vm857, %v851
      %865 = vst.msk [vmem:[%s270 + $0x38] sm:$0xff] %vm857, %v852
      %866 = vst.msk [vmem:[%s270 + $0x40] sm:$0xff] %vm857, %v853
      %867 = vst.msk [vmem:[%s270 + $0x48] sm:$0xff] %vm857, %v854
      %868 = vst.msk [vmem:[%s270 + $0x50] sm:$0xff] %vm857, %v855
      %869 = vst.msk [vmem:[%s270 + $0x58] sm:$0xff] %vm857, %v856
      %s870 = smul.u32 12, %s16
      %p871 = scmp.lt.s32.totalorder %s870, 35
      %s872 = scalar_select %p871, %s870, 35
      %s873 = smul.addr %s872, 8
      %s874 = scalar_lea.vmem %s5, %s873
      // Predicated region
      $region41: #{tpu_custom_call.1} parent=39 // pred_check
        %p875 = pneg %p154
      $region42: #{tpu_custom_call.1} parent=39 // pred_check_branch
        %877 = sbr.rel (%p875) target = $region44
      $region43: #{tpu_custom_call.1} parent=39 // pred_region
        %s878 = smul.u32 12, %s16
      $region44: #{tpu_custom_call.1} parent=39 // pred_fallthru
        _
    $region40: #{tpu_custom_call.1} parent=5 // pred_fallthru
      _
    %p879 = scmp.le.s32.totalorder 2, %s11
    // Predicated region
    $region45: #{tpu_custom_call.1} parent=5 // pred_check
      %p880 = pneg %p879
    $region46: #{tpu_custom_call.1} parent=5 // pred_check_branch
      %882 = sbr.rel (%p880) target = $region48
    $region47: #{tpu_custom_call.1} parent=5 // pred_region
      %s883 = ssub.s32 %s11, 2
      // Predicated region
      $region49: #{tpu_custom_call.1} parent=47 // pred_check
        %p884 = pneg %p160
      $region50: #{tpu_custom_call.1} parent=47 // pred_check_branch
        %886 = sbr.rel (%p884) target = $region52
      $region51: #{tpu_custom_call.1} parent=47 // pred_region
        %s887 = smul.u32 12, %s17
        %p888 = scmp.lt.s32.totalorder %s887, 35
        %s889 = scalar_select %p888, %s887, 35
        %s890 = smul.addr %s889, 8
        %s891 = scalar_lea.vmem %s5, %s890
      $region52: #{tpu_custom_call.1} parent=47 // pred_fallthru
        _
    $region48: #{tpu_custom_call.1} parent=5 // pred_fallthru
      _
  $region6: #{tpu_custom_call.1} parent=0 // loop_footer
    %s15 = sadd.s32 1, %s11
  $region7: #{tpu_custom_call.1} parent=0 // loop_footer_branch
    %10 = sbr.rel target = $region3
  $region8: #{tpu_custom_call.1} parent=0 // loop_exit
    _

</llo_original>
